<compile_context>
chip_gen: v7x
topology: tpu7x:2x2x1
jax: 0.10.0
libtpu: 0.0.40
codegen_flags: <defaults>
</compile_context>

<pallas_src>
import jax
import jax.numpy as jnp
from jax.experimental import pallas as pl
from jax.experimental.pallas import tpu as pltpu


def _round_up(x, m):
    return ((x + m - 1) // m) * m


def _chip_has_two_tensorcores():
    """Best-effort detection of a 2-TensorCore chip (v7x).  Safe fallback: 1."""
    try:
        kind = jax.devices()[0].device_kind.lower()
    except Exception:
        return False
    return "v7" in kind


# ------------------------------ fused kernel ---------------------------------

def _make_inconv_kernel(W, L, c_in_pad, c_mid_pad, c_out):
    """One step: x (c_in_pad, L) -> out (c_out, L), channels-first, lane = pixels."""
    # tap t = ky*3 + kx  <->  flat input offset d = (ky-1)*W + (kx-1)
    offs = [(ky - 1) * W + (kx - 1) for ky in range(3) for kx in range(3)]
    K1 = 9 * c_in_pad
    K2 = 9 * c_mid_pad

    def kernel(x_ref, w_ref, bvec_ref, mask_ref, o_ref):

        def taps(a):
            # a: (C, L) f32 -> (9*C, L) bf16, taps stacked on the contraction
            # axis.  "same" zero padding = XLU lane roll + 0/1 edge mask; the
            # mask also kills any cross-image wrap when the batch is folded
            # onto the lane axis.
            rows = []
            for t in range(9):
                d = offs[t]
                if d == 0:
                    rows.append(a)
                else:
                    rows.append(pltpu.roll(a, (-d) % L, axis=1) * mask_ref[t])
            return jnp.concatenate(rows, axis=0).astype(jnp.bfloat16)

        x = x_ref[0]                                         # (c_in_pad, L) f32

        # ---- stage 1+2 (conv_metric & conv_img fused, block-diag weights):
        # ---- ONE MXU matmul, K = 9*c_in_pad, then bias + ReLU.
        t1 = taps(x)                                         # (K1, L) bf16
        w1 = w_ref[0:c_mid_pad, 0:K1].astype(jnp.bfloat16)   # (c_mid_pad, K1)
        h = jnp.dot(w1, t1, preferred_element_type=jnp.float32)
        h = jnp.maximum(h + bvec_ref[:, 0:1], 0.0)           # (c_mid_pad, L)

        # ---- stage 3 (final conv over the already-concatenated activations):
        # ---- ONE MXU matmul, K = 9*c_mid_pad, then bias + per-channel PReLU.
        t2 = taps(h)                                         # (K2, L) bf16
        w2 = w_ref[c_mid_pad:c_mid_pad + c_out, 0:K2].astype(jnp.bfloat16)
        y = jnp.dot(w2, t2, preferred_element_type=jnp.float32)   # (c_out, L)
        y = y + bvec_ref[0:c_out, 1:2]
        alpha = bvec_ref[0:c_out, 2:3]
        o_ref[0] = jnp.where(y >= 0.0, y, alpha * y).astype(o_ref.dtype)

    return kernel


# ------------------------------ weight packing --------------------------------

def _pack_stage1_weights(w_met, w_img, c_in_pad, c_mid_pad):
    """Block-diagonal [conv_metric ; conv_img] -> (c_mid_pad, 9*c_in_pad)."""
    c_met_out = w_met.shape[-1]
    c_img_in, c_img_out = w_img.shape[2], w_img.shape[3]
    c_mid = c_met_out + c_img_out
    wm = jnp.transpose(w_met, (0, 1, 3, 2)).reshape(9, c_met_out, 1)
    wi = jnp.transpose(w_img, (0, 1, 3, 2)).reshape(9, c_img_out, c_img_in)
    blocks = jnp.zeros((9, c_mid_pad, c_in_pad), jnp.float32)
    blocks = blocks.at[:, 0:c_met_out, 0:1].set(wm)                 # metric rows
    blocks = blocks.at[:, c_met_out:c_mid, 1:1 + c_img_in].set(wi)  # image rows
    return jnp.transpose(blocks, (1, 0, 2)).reshape(c_mid_pad, 9 * c_in_pad)


def _pack_stage2_weights(w_cat, c_mid_pad):
    """Final conv -> (c_out, 9*c_mid_pad), tap-major along the contraction axis."""
    c_mid, c_out = w_cat.shape[2], w_cat.shape[3]
    wc = jnp.transpose(w_cat, (0, 1, 3, 2)).reshape(9, c_out, c_mid)
    blocks = jnp.zeros((9, c_out, c_mid_pad), jnp.float32)
    blocks = blocks.at[:, :, 0:c_mid].set(wc)
    return jnp.transpose(blocks, (1, 0, 2)).reshape(c_out, 9 * c_mid_pad)


def _edge_mask(H, W, reps):
    """(9, 1, reps*H*W) 0/1 masks: 1 where the shifted source pixel is in-bounds."""
    p = jnp.arange(H * W, dtype=jnp.int32)
    yc, xc = p // W, p % W
    rows = []
    for ky in range(3):
        for kx in range(3):
            dy, dx = ky - 1, kx - 1
            ok = ((yc + dy >= 0) & (yc + dy < H) &
                  (xc + dx >= 0) & (xc + dx < W))
            rows.append(ok)
    m = jnp.stack(rows).astype(jnp.float32).reshape(9, 1, H * W)
    if reps > 1:
        m = jnp.tile(m, (1, 1, reps))
    return m


# ---------------------------------- wrapper -----------------------------------

def inconv_forward(x1, x2, params, *, batch_in_grid=None):
    """x1: metric (N, 1, H, W); x2: image (N, C, H, W); NCHW in / NCHW out."""
    N, _, H, W = x1.shape
    c_img_in = x2.shape[1]
    HW = H * W
    c_img_out = params["w_img"].shape[-1]
    c_met_out = params["w_met"].shape[-1]
    c_out = c_met_out + c_img_out                 # == c_cat of the final conv

    c_in_all = 1 + c_img_in
    c_in_pad = _round_up(c_in_all, 8)
    c_mid_pad = _round_up(c_out, 8)

    if batch_in_grid is None:
        # v7x: keep batch as a "parallel" grid axis (2 TCs); otherwise fold it.
        batch_in_grid = _chip_has_two_tensorcores() and N > 1

    # Channels-first activations; torch.cat is folded into the channel stack.
    x_all = jnp.concatenate([x1, x2], axis=1)               # (N, c_in_all, H, W)
    if c_in_pad > c_in_all:
        x_all = jnp.pad(x_all, ((0, 0), (0, c_in_pad - c_in_all), (0, 0), (0, 0)))

    if batch_in_grid:
        G, L, reps = N, HW, 1
        x_in = x_all.reshape(N, c_in_pad, HW)
    else:
        # Single-TC chips: fold batch onto the lane axis -> one grid step,
        # lane-dense (C, N*HW) slabs.
        G, L, reps = 1, N * HW, N
        x_in = jnp.transpose(x_all, (1, 0, 2, 3)).reshape(1, c_in_pad, N * HW)

    # One weight slab (f32; cast to bf16 in-kernel after tile-aligned slicing).
    W1 = _pack_stage1_weights(params["w_met"], params["w_img"], c_in_pad, c_mid_pad)
    W2 = _pack_stage2_weights(params["w"], c_mid_pad)
    K1, K2 = 9 * c_in_pad, 9 * c_mid_pad
    Kmax = max(K1, K2)
    w_slab = jnp.zeros((c_mid_pad + c_out, Kmax), jnp.float32)
    w_slab = w_slab.at[0:c_mid_pad, 0:K1].set(W1)
    w_slab = w_slab.at[c_mid_pad:c_mid_pad + c_out, 0:K2].set(W2)

    # One bias/alpha slab: col 0 = stage-1 bias, col 1 = final bias, col 2 = PReLU.
    bvec = jnp.zeros((c_mid_pad, 3), jnp.float32)
    bvec = bvec.at[0:c_met_out, 0].set(params["b_met"])
    bvec = bvec.at[c_met_out:c_out, 0].set(params["b_img"])
    bvec = bvec.at[0:c_out, 1].set(params["b"])
    bvec = bvec.at[0:c_out, 2].set(params["alpha"])

    mask = _edge_mask(H, W, reps)                            # (9, 1, L)

    kernel = _make_inconv_kernel(W, L, c_in_pad, c_mid_pad, c_out)

    out = pl.pallas_call(
        kernel,
        out_shape=jax.ShapeDtypeStruct((G, c_out, L), jnp.float32),
        grid_spec=pltpu.PrefetchScalarGridSpec(
            num_scalar_prefetch=0,
            grid=(G,),
            in_specs=[
                pl.BlockSpec((1, c_in_pad, L), lambda n: (n, 0, 0)),
                pl.BlockSpec((c_mid_pad + c_out, Kmax), lambda n: (0, 0)),
                pl.BlockSpec((c_mid_pad, 3), lambda n: (0, 0)),
                pl.BlockSpec((9, 1, L), lambda n: (0, 0, 0)),
            ],
            out_specs=pl.BlockSpec((1, c_out, L), lambda n: (n, 0, 0)),
        ),
        compiler_params=pltpu.CompilerParams(
            # batch axis shards across TensorCores on v7x; harmless elsewhere.
            dimension_semantics=("parallel",),
        ),
    )(x_in, w_slab, bvec, mask)

    if batch_in_grid:
        return out.reshape(N, c_out, H, W)
    return out.reshape(c_out, N, H, W).transpose(1, 0, 2, 3)


# ------------------------- parameters (InConv spec) ---------------------------

def init_params(key, out_channels):
    """Deterministic synthetic parameters matching InConv(out_channels)."""
    c_img_out = out_channels // 2   # conv_img : out_channels -> out_channels//2
    c_met_out = out_channels // 6   # conv_metric : 1 -> out_channels//6
    c_cat = c_img_out + c_met_out   # conv : c_cat -> c_cat

    ks = jax.random.split(key, 6)

    def uinit(k, shape, fan_in):
        bound = 1.0 / jnp.sqrt(fan_in)
        return jax.random.uniform(k, shape, jnp.float32, -bound, bound)

    return {
        "w_img": uinit(ks[0], (3, 3, out_channels, c_img_out), 9 * out_channels),
        "b_img": uinit(ks[1], (c_img_out,), 9 * out_channels),
        "w_met": uinit(ks[2], (3, 3, 1, c_met_out), 9 * 1),
        "b_met": uinit(ks[3], (c_met_out,), 9 * 1),
        "w": uinit(ks[4], (3, 3, c_cat, c_cat), 9 * c_cat),
        "b": uinit(ks[5], (c_cat,), 9 * c_cat),
        # PReLU per-channel slope (PyTorch default 0.25 + small offset).
        "alpha": 0.25 + 0.01 * jnp.arange(c_cat, dtype=jnp.float32),
    }


# ------------------------------ reference (JAX) -------------------------------

def _conv_ref_nchw(x, w_hwio, b):
    w_oihw = jnp.transpose(w_hwio, (3, 2, 0, 1))
    y = jax.lax.conv_general_dilated(
        x, w_oihw, window_strides=(1, 1), padding=((1, 1), (1, 1)),
        dimension_numbers=("NCHW", "OIHW", "NCHW"))
    return y + b[None, :, None, None]


def inconv_ref(x1, x2, params):
    y2 = _conv_ref_nchw(x2, params["w_img"], params["b_img"])
    y1 = _conv_ref_nchw(x1, params["w_met"], params["b_met"])
    x = jnp.concatenate([jnp.maximum(y1, 0.0), jnp.maximum(y2, 0.0)], axis=1)
    y = _conv_ref_nchw(x, params["w"], params["b"])
    a = params["alpha"][None, :, None, None]
    return jnp.where(y >= 0.0, y, a * y)


if __name__ == "__main__":
    out_channels = 12        # InConv(out_channels=12, img_metric=False)
    N, H, W = 2, 16, 16

    key = jax.random.PRNGKey(0)
    k_p, k_x1, k_x2 = jax.random.split(key, 3)

    params = init_params(k_p, out_channels)
    x1 = jax.random.normal(k_x1, (N, 1, H, W), jnp.float32)              # metric
    x2 = jax.random.normal(k_x2, (N, out_channels, H, W), jnp.float32)   # image

    ref = jax.block_until_ready(inconv_ref(x1, x2, params))
    c_cat = out_channels // 2 + out_channels // 6
    assert ref.shape == (N, c_cat, H, W)

    # Default: chip-aware batch layout.
    fwd = jax.jit(inconv_forward)
    out = jax.block_until_ready(fwd(x1, x2, params))
    assert out.shape == ref.shape
    assert jnp.allclose(out, ref, rtol=2e-2, atol=2e-2), "mismatch vs reference"

    # Exercise both batch layouts (lane-folded and grid-over-batch) so the
    # kernel is validated regardless of the chip generation it lands on.
    for mode in (False, True):
        f = jax.jit(lambda a, b, p, _m=mode: inconv_forward(a, b, p, batch_in_grid=_m))
        o = jax.block_until_ready(f(x1, x2, params))
        assert jnp.allclose(o, ref, rtol=2e-2, atol=2e-2), \
            f"mismatch vs reference (batch_in_grid={mode})"

    print("KERNEL_OK")
</pallas_src>

<mosaic_0001>
module attributes {stable_mosaic.version = 11 : i64} {
  func.func @kernel(%arg0: i32, %arg1: memref<1x16x512xf32, #tpu.memory_space<vmem>>, %arg2: memref<16x144xf32, #tpu.memory_space<vmem>>, %arg3: memref<8x3xf32, #tpu.memory_space<vmem>>, %arg4: memref<9x1x512xf32, #tpu.memory_space<vmem>>, %arg5: memref<1x8x512xf32, #tpu.memory_space<vmem>>) attributes {dimension_semantics = [#tpu.dimension_semantics<parallel>], iteration_bounds = array<i64: 1>, scalar_prefetch = 0 : i64, scratch_operands = 0 : i64, tpu.core_type = #tpu.core_type<tc>, window_params = [{transform_indices = @transform_0, window_bounds = array<i64: 1, 16, 512>}, {pipeline_mode = #tpu.pipeline_mode<synchronous>, transform_indices = @transform_1, window_bounds = array<i64: 16, 144>}, {pipeline_mode = #tpu.pipeline_mode<synchronous>, transform_indices = @transform_2, window_bounds = array<i64: 8, 3>}, {pipeline_mode = #tpu.pipeline_mode<synchronous>, transform_indices = @transform_3, window_bounds = array<i64: 9, 1, 512>}, {transform_indices = @transform_4, window_bounds = array<i64: 1, 8, 512>}]} {
    %c0 = arith.constant 0 : index
    %c0_0 = arith.constant 0 : index
    %c0_1 = arith.constant 0 : index
    %0 = vector.load %arg1[%c0, %c0_0, %c0_1] : memref<1x16x512xf32, #tpu.memory_space<vmem>>, vector<1x16x512xf32>
    %1 = vector.shape_cast %0 : vector<1x16x512xf32> to vector<16x512xf32>
    %c17_i32 = arith.constant 17 : i32
    %2 = tpu.dynamic_rotate %1 by %c17_i32 dim 1 : vector<16x512xf32>, i32 -> vector<16x512xf32>
    %c0_2 = arith.constant 0 : index
    %c0_3 = arith.constant 0 : index
    %c0_4 = arith.constant 0 : index
    %3 = vector.load %arg4[%c0_2, %c0_3, %c0_4] : memref<9x1x512xf32, #tpu.memory_space<vmem>>, vector<1x1x512xf32>
    %4 = vector.shape_cast %3 : vector<1x1x512xf32> to vector<1x512xf32>
    %5 = vector.broadcast %4 : vector<1x512xf32> to vector<16x512xf32>
    %6 = arith.mulf %2, %5 : vector<16x512xf32>
    %c16_i32 = arith.constant 16 : i32
    %7 = tpu.dynamic_rotate %1 by %c16_i32 dim 1 : vector<16x512xf32>, i32 -> vector<16x512xf32>
    %c1 = arith.constant 1 : index
    %c0_5 = arith.constant 0 : index
    %c0_6 = arith.constant 0 : index
    %8 = vector.load %arg4[%c1, %c0_5, %c0_6] : memref<9x1x512xf32, #tpu.memory_space<vmem>>, vector<1x1x512xf32>
    %9 = vector.shape_cast %8 : vector<1x1x512xf32> to vector<1x512xf32>
    %10 = vector.broadcast %9 : vector<1x512xf32> to vector<16x512xf32>
    %11 = arith.mulf %7, %10 : vector<16x512xf32>
    %c15_i32 = arith.constant 15 : i32
    %12 = tpu.dynamic_rotate %1 by %c15_i32 dim 1 : vector<16x512xf32>, i32 -> vector<16x512xf32>
    %c2 = arith.constant 2 : index
    %c0_7 = arith.constant 0 : index
    %c0_8 = arith.constant 0 : index
    %13 = vector.load %arg4[%c2, %c0_7, %c0_8] : memref<9x1x512xf32, #tpu.memory_space<vmem>>, vector<1x1x512xf32>
    %14 = vector.shape_cast %13 : vector<1x1x512xf32> to vector<1x512xf32>
    %15 = vector.broadcast %14 : vector<1x512xf32> to vector<16x512xf32>
    %16 = arith.mulf %12, %15 : vector<16x512xf32>
    %c1_i32 = arith.constant 1 : i32
    %17 = tpu.dynamic_rotate %1 by %c1_i32 dim 1 : vector<16x512xf32>, i32 -> vector<16x512xf32>
    %c3 = arith.constant 3 : index
    %c0_9 = arith.constant 0 : index
    %c0_10 = arith.constant 0 : index
    %18 = vector.load %arg4[%c3, %c0_9, %c0_10] : memref<9x1x512xf32, #tpu.memory_space<vmem>>, vector<1x1x512xf32>
    %19 = vector.shape_cast %18 : vector<1x1x512xf32> to vector<1x512xf32>
    %20 = vector.broadcast %19 : vector<1x512xf32> to vector<16x512xf32>
    %21 = arith.mulf %17, %20 : vector<16x512xf32>
    %c511_i32 = arith.constant 511 : i32
    %22 = tpu.dynamic_rotate %1 by %c511_i32 dim 1 : vector<16x512xf32>, i32 -> vector<16x512xf32>
    %c5 = arith.constant 5 : index
    %c0_11 = arith.constant 0 : index
    %c0_12 = arith.constant 0 : index
    %23 = vector.load %arg4[%c5, %c0_11, %c0_12] : memref<9x1x512xf32, #tpu.memory_space<vmem>>, vector<1x1x512xf32>
    %24 = vector.shape_cast %23 : vector<1x1x512xf32> to vector<1x512xf32>
    %25 = vector.broadcast %24 : vector<1x512xf32> to vector<16x512xf32>
    %26 = arith.mulf %22, %25 : vector<16x512xf32>
    %c497_i32 = arith.constant 497 : i32
    %27 = tpu.dynamic_rotate %1 by %c497_i32 dim 1 : vector<16x512xf32>, i32 -> vector<16x512xf32>
    %c6 = arith.constant 6 : index
    %c0_13 = arith.constant 0 : index
    %c0_14 = arith.constant 0 : index
    %28 = vector.load %arg4[%c6, %c0_13, %c0_14] : memref<9x1x512xf32, #tpu.memory_space<vmem>>, vector<1x1x512xf32>
    %29 = vector.shape_cast %28 : vector<1x1x512xf32> to vector<1x512xf32>
    %30 = vector.broadcast %29 : vector<1x512xf32> to vector<16x512xf32>
    %31 = arith.mulf %27, %30 : vector<16x512xf32>
    %c496_i32 = arith.constant 496 : i32
    %32 = tpu.dynamic_rotate %1 by %c496_i32 dim 1 : vector<16x512xf32>, i32 -> vector<16x512xf32>
    %c7 = arith.constant 7 : index
    %c0_15 = arith.constant 0 : index
    %c0_16 = arith.constant 0 : index
    %33 = vector.load %arg4[%c7, %c0_15, %c0_16] : memref<9x1x512xf32, #tpu.memory_space<vmem>>, vector<1x1x512xf32>
    %34 = vector.shape_cast %33 : vector<1x1x512xf32> to vector<1x512xf32>
    %35 = vector.broadcast %34 : vector<1x512xf32> to vector<16x512xf32>
    %36 = arith.mulf %32, %35 : vector<16x512xf32>
    %c495_i32 = arith.constant 495 : i32
    %37 = tpu.dynamic_rotate %1 by %c495_i32 dim 1 : vector<16x512xf32>, i32 -> vector<16x512xf32>
    %c8 = arith.constant 8 : index
    %c0_17 = arith.constant 0 : index
    %c0_18 = arith.constant 0 : index
    %38 = vector.load %arg4[%c8, %c0_17, %c0_18] : memref<9x1x512xf32, #tpu.memory_space<vmem>>, vector<1x1x512xf32>
    %39 = vector.shape_cast %38 : vector<1x1x512xf32> to vector<1x512xf32>
    %40 = vector.broadcast %39 : vector<1x512xf32> to vector<16x512xf32>
    %41 = arith.mulf %37, %40 : vector<16x512xf32>
    %42 = tpu.concatenate %6, %11, %16, %21, %1, %26, %31, %36, %41 in 0 : vector<16x512xf32>, vector<16x512xf32>, vector<16x512xf32>, vector<16x512xf32>, vector<16x512xf32>, vector<16x512xf32>, vector<16x512xf32>, vector<16x512xf32>, vector<16x512xf32> -> vector<144x512xf32>
    %43 = arith.truncf %42 : vector<144x512xf32> to vector<144x512xbf16>
    %c0_19 = arith.constant 0 : index
    %c0_20 = arith.constant 0 : index
    %44 = vector.load %arg2[%c0_19, %c0_20] : memref<16x144xf32, #tpu.memory_space<vmem>>, vector<8x144xf32>
    %45 = arith.truncf %44 : vector<8x144xf32> to vector<8x144xbf16>
    %cst = arith.constant dense<0.000000e+00> : vector<8x512xf32>
    %46 = tpu.matmul %45, %43, %cst {dimension_numbers = #tpu.dot_dimension_numbers<[1], [0], [0], [1], [0, 0, 1, 1], [], []>} : vector<8x144xbf16>, vector<144x512xbf16>, vector<8x512xf32> -> vector<8x512xf32>
    %c0_21 = arith.constant 0 : index
    %c0_22 = arith.constant 0 : index
    %47 = vector.load %arg3[%c0_21, %c0_22] : memref<8x3xf32, #tpu.memory_space<vmem>>, vector<8x1xf32>
    %48 = vector.broadcast %47 : vector<8x1xf32> to vector<8x512xf32>
    %49 = arith.addf %46, %48 : vector<8x512xf32>
    %cst_23 = arith.constant 0.000000e+00 : f32
    %50 = vector.broadcast %cst_23 : f32 to vector<8x512xf32>
    %51 = arith.maximumf %49, %50 : vector<8x512xf32>
    %c17_i32_24 = arith.constant 17 : i32
    %52 = tpu.dynamic_rotate %51 by %c17_i32_24 dim 1 : vector<8x512xf32>, i32 -> vector<8x512xf32>
    %c0_25 = arith.constant 0 : index
    %c0_26 = arith.constant 0 : index
    %c0_27 = arith.constant 0 : index
    %53 = vector.load %arg4[%c0_25, %c0_26, %c0_27] : memref<9x1x512xf32, #tpu.memory_space<vmem>>, vector<1x1x512xf32>
    %54 = vector.shape_cast %53 : vector<1x1x512xf32> to vector<1x512xf32>
    %55 = vector.broadcast %54 : vector<1x512xf32> to vector<8x512xf32>
    %56 = arith.mulf %52, %55 : vector<8x512xf32>
    %c16_i32_28 = arith.constant 16 : i32
    %57 = tpu.dynamic_rotate %51 by %c16_i32_28 dim 1 : vector<8x512xf32>, i32 -> vector<8x512xf32>
    %c1_29 = arith.constant 1 : index
    %c0_30 = arith.constant 0 : index
    %c0_31 = arith.constant 0 : index
    %58 = vector.load %arg4[%c1_29, %c0_30, %c0_31] : memref<9x1x512xf32, #tpu.memory_space<vmem>>, vector<1x1x512xf32>
    %59 = vector.shape_cast %58 : vector<1x1x512xf32> to vector<1x512xf32>
    %60 = vector.broadcast %59 : vector<1x512xf32> to vector<8x512xf32>
    %61 = arith.mulf %57, %60 : vector<8x512xf32>
    %c15_i32_32 = arith.constant 15 : i32
    %62 = tpu.dynamic_rotate %51 by %c15_i32_32 dim 1 : vector<8x512xf32>, i32 -> vector<8x512xf32>
    %c2_33 = arith.constant 2 : index
    %c0_34 = arith.constant 0 : index
    %c0_35 = arith.constant 0 : index
    %63 = vector.load %arg4[%c2_33, %c0_34, %c0_35] : memref<9x1x512xf32, #tpu.memory_space<vmem>>, vector<1x1x512xf32>
    %64 = vector.shape_cast %63 : vector<1x1x512xf32> to vector<1x512xf32>
    %65 = vector.broadcast %64 : vector<1x512xf32> to vector<8x512xf32>
    %66 = arith.mulf %62, %65 : vector<8x512xf32>
    %c1_i32_36 = arith.constant 1 : i32
    %67 = tpu.dynamic_rotate %51 by %c1_i32_36 dim 1 : vector<8x512xf32>, i32 -> vector<8x512xf32>
    %c3_37 = arith.constant 3 : index
    %c0_38 = arith.constant 0 : index
    %c0_39 = arith.constant 0 : index
    %68 = vector.load %arg4[%c3_37, %c0_38, %c0_39] : memref<9x1x512xf32, #tpu.memory_space<vmem>>, vector<1x1x512xf32>
    %69 = vector.shape_cast %68 : vector<1x1x512xf32> to vector<1x512xf32>
    %70 = vector.broadcast %69 : vector<1x512xf32> to vector<8x512xf32>
    %71 = arith.mulf %67, %70 : vector<8x512xf32>
    %c511_i32_40 = arith.constant 511 : i32
    %72 = tpu.dynamic_rotate %51 by %c511_i32_40 dim 1 : vector<8x512xf32>, i32 -> vector<8x512xf32>
    %c5_41 = arith.constant 5 : index
    %c0_42 = arith.constant 0 : index
    %c0_43 = arith.constant 0 : index
    %73 = vector.load %arg4[%c5_41, %c0_42, %c0_43] : memref<9x1x512xf32, #tpu.memory_space<vmem>>, vector<1x1x512xf32>
    %74 = vector.shape_cast %73 : vector<1x1x512xf32> to vector<1x512xf32>
    %75 = vector.broadcast %74 : vector<1x512xf32> to vector<8x512xf32>
    %76 = arith.mulf %72, %75 : vector<8x512xf32>
    %c497_i32_44 = arith.constant 497 : i32
    %77 = tpu.dynamic_rotate %51 by %c497_i32_44 dim 1 : vector<8x512xf32>, i32 -> vector<8x512xf32>
    %c6_45 = arith.constant 6 : index
    %c0_46 = arith.constant 0 : index
    %c0_47 = arith.constant 0 : index
    %78 = vector.load %arg4[%c6_45, %c0_46, %c0_47] : memref<9x1x512xf32, #tpu.memory_space<vmem>>, vector<1x1x512xf32>
    %79 = vector.shape_cast %78 : vector<1x1x512xf32> to vector<1x512xf32>
    %80 = vector.broadcast %79 : vector<1x512xf32> to vector<8x512xf32>
    %81 = arith.mulf %77, %80 : vector<8x512xf32>
    %c496_i32_48 = arith.constant 496 : i32
    %82 = tpu.dynamic_rotate %51 by %c496_i32_48 dim 1 : vector<8x512xf32>, i32 -> vector<8x512xf32>
    %c7_49 = arith.constant 7 : index
    %c0_50 = arith.constant 0 : index
    %c0_51 = arith.constant 0 : index
    %83 = vector.load %arg4[%c7_49, %c0_50, %c0_51] : memref<9x1x512xf32, #tpu.memory_space<vmem>>, vector<1x1x512xf32>
    %84 = vector.shape_cast %83 : vector<1x1x512xf32> to vector<1x512xf32>
    %85 = vector.broadcast %84 : vector<1x512xf32> to vector<8x512xf32>
    %86 = arith.mulf %82, %85 : vector<8x512xf32>
    %c495_i32_52 = arith.constant 495 : i32
    %87 = tpu.dynamic_rotate %51 by %c495_i32_52 dim 1 : vector<8x512xf32>, i32 -> vector<8x512xf32>
    %c8_53 = arith.constant 8 : index
    %c0_54 = arith.constant 0 : index
    %c0_55 = arith.constant 0 : index
    %88 = vector.load %arg4[%c8_53, %c0_54, %c0_55] : memref<9x1x512xf32, #tpu.memory_space<vmem>>, vector<1x1x512xf32>
    %89 = vector.shape_cast %88 : vector<1x1x512xf32> to vector<1x512xf32>
    %90 = vector.broadcast %89 : vector<1x512xf32> to vector<8x512xf32>
    %91 = arith.mulf %87, %90 : vector<8x512xf32>
    %92 = tpu.concatenate %56, %61, %66, %71, %51, %76, %81, %86, %91 in 0 : vector<8x512xf32>, vector<8x512xf32>, vector<8x512xf32>, vector<8x512xf32>, vector<8x512xf32>, vector<8x512xf32>, vector<8x512xf32>, vector<8x512xf32>, vector<8x512xf32> -> vector<72x512xf32>
    %93 = arith.truncf %92 : vector<72x512xf32> to vector<72x512xbf16>
    %c8_56 = arith.constant 8 : index
    %c0_57 = arith.constant 0 : index
    %94 = vector.load %arg2[%c8_56, %c0_57] : memref<16x144xf32, #tpu.memory_space<vmem>>, vector<8x72xf32>
    %95 = arith.truncf %94 : vector<8x72xf32> to vector<8x72xbf16>
    %cst_58 = arith.constant dense<0.000000e+00> : vector<8x512xf32>
    %96 = tpu.matmul %95, %93, %cst_58 {dimension_numbers = #tpu.dot_dimension_numbers<[1], [0], [0], [1], [0, 0, 1, 1], [], []>} : vector<8x72xbf16>, vector<72x512xbf16>, vector<8x512xf32> -> vector<8x512xf32>
    %c0_59 = arith.constant 0 : index
    %c1_60 = arith.constant 1 : index
    %97 = vector.load %arg3[%c0_59, %c1_60] : memref<8x3xf32, #tpu.memory_space<vmem>>, vector<8x1xf32>
    %98 = vector.broadcast %97 : vector<8x1xf32> to vector<8x512xf32>
    %99 = arith.addf %96, %98 : vector<8x512xf32>
    %c0_61 = arith.constant 0 : index
    %c2_62 = arith.constant 2 : index
    %100 = vector.load %arg3[%c0_61, %c2_62] : memref<8x3xf32, #tpu.memory_space<vmem>>, vector<8x1xf32>
    %cst_63 = arith.constant 0.000000e+00 : f32
    %101 = vector.broadcast %cst_63 : f32 to vector<8x512xf32>
    %102 = arith.cmpf oge, %99, %101 : vector<8x512xf32>
    %103 = vector.broadcast %100 : vector<8x1xf32> to vector<8x512xf32>
    %104 = arith.mulf %103, %99 : vector<8x512xf32>
    %105 = arith.select %102, %99, %104 : vector<8x512xi1>, vector<8x512xf32>
    %c0_64 = arith.constant 0 : index
    %c0_65 = arith.constant 0 : index
    %c0_66 = arith.constant 0 : index
    %106 = vector.load %arg5[%c0_64, %c0_65, %c0_66] : memref<1x8x512xf32, #tpu.memory_space<vmem>>, vector<1x8x512xf32>
    %107 = vector.shape_cast %106 : vector<1x8x512xf32> to vector<8x512xf32>
    %108 = vector.shape_cast %105 : vector<8x512xf32> to vector<1x8x512xf32>
    tpu.vector_store %arg5[%c0_64, %c0_65, %c0_66], %108 {strides = array<i32>} : memref<1x8x512xf32, #tpu.memory_space<vmem>>, vector<1x8x512xf32>,
    return
  }
  func.func @transform_0(%arg0: i32) -> (i32, i32, i32) {
    %c0_i32 = arith.constant 0 : i32
    %c0_i32_0 = arith.constant 0 : i32
    %c0_i32_1 = arith.constant 0 : i32
    return %arg0, %c0_i32, %c0_i32_0 : i32, i32, i32
  }
  func.func @transform_1(%arg0: i32) -> (i32, i32) {
    %c0_i32 = arith.constant 0 : i32
    %c0_i32_0 = arith.constant 0 : i32
    %c0_i32_1 = arith.constant 0 : i32
    return %c0_i32, %c0_i32_0 : i32, i32
  }
  func.func @transform_2(%arg0: i32) -> (i32, i32) {
    %c0_i32 = arith.constant 0 : i32
    %c0_i32_0 = arith.constant 0 : i32
    %c0_i32_1 = arith.constant 0 : i32
    return %c0_i32, %c0_i32_0 : i32, i32
  }
  func.func @transform_3(%arg0: i32) -> (i32, i32, i32) {
    %c0_i32 = arith.constant 0 : i32
    %c0_i32_0 = arith.constant 0 : i32
    %c0_i32_1 = arith.constant 0 : i32
    %c0_i32_2 = arith.constant 0 : i32
    return %c0_i32, %c0_i32_0, %c0_i32_1 : i32, i32, i32
  }
  func.func @transform_4(%arg0: i32) -> (i32, i32, i32) {
    %c0_i32 = arith.constant 0 : i32
    %c0_i32_0 = arith.constant 0 : i32
    %c0_i32_1 = arith.constant 0 : i32
    return %arg0, %c0_i32, %c0_i32_0 : i32, i32, i32
  }
}

</mosaic_0001>

<llo_original>
// kernel: inconv_forward.1
$region0: #{inconv_forward.1}
  #allocation0 [shape = 'u32[]', space=smem, size = 0x4, offset = 0x4, fixed_abs, tag = 'smem constant byte address 0x4 - core index']
  #allocation1 [shape = 'u32[144,128]{1,0:T(1,128)}', space=vmem, size = 0x12000, scoped, tag = 'internal scratch']
  %s0 = inlined_call_operand.vmem [shape: f32[1,16,512], index: 0, kind: input, shape index: {}]
  %s1 = inlined_call_operand.vmem [shape: f32[16,144], index: 1, kind: input, shape index: {}]
  %s2 = inlined_call_operand.vmem [shape: f32[8,3], index: 2, kind: input, shape index: {}]
  %s3 = inlined_call_operand.vmem [shape: f32[9,1,512], index: 3, kind: input, shape index: {}]
  %s4 = inlined_call_operand.vmem [shape: f32[1,8,512], index: 4, kind: output, shape index: {}]
  %s5 = sld [smem:[#allocation0]]
  $region26: #{inconv_forward.1} parent=0
    _
  %s7 = ssub.s32 1, %s5
  %s8 = scalar_select 0, %s7, %s5
  // Predicated region
  $region2: #{inconv_forward.1} parent=0 // pred_check
    _
  $region3: #{inconv_forward.1} parent=0 // pred_check_branch
    %10 = sbr.rel (0) target = $region5
  $region4: #{inconv_forward.1} parent=0 // pred_region
    _
  $region5: #{inconv_forward.1} parent=0 // pred_fallthru
    _
  // Predicated region
  $region6: #{inconv_forward.1} parent=0 // pred_check
    _
  $region7: #{inconv_forward.1} parent=0 // pred_check_branch
    %12 = sbr.rel (0) target = $region9
  $region8: #{inconv_forward.1} parent=0 // pred_region
    _
  $region9: #{inconv_forward.1} parent=0 // pred_fallthru
    _
  // Predicated region
  $region10: #{inconv_forward.1} parent=0 // pred_check
    _
  $region11: #{inconv_forward.1} parent=0 // pred_check_branch
    %14 = sbr.rel (0) target = $region13
  $region12: #{inconv_forward.1} parent=0 // pred_region
    _
  $region13: #{inconv_forward.1} parent=0 // pred_fallthru
    _
  // Predicated region
  $region14: #{inconv_forward.1} parent=0 // pred_check
    _
  $region15: #{inconv_forward.1} parent=0 // pred_check_branch
    %16 = sbr.rel (0) target = $region17
  $region16: #{inconv_forward.1} parent=0 // pred_region
    _
  $region17: #{inconv_forward.1} parent=0 // pred_fallthru
    _
  %v18 = vld [vmem:[%s0] sm:$0xff]
  %v19 = vld [vmem:[%s0 + $0x8] sm:$0xff]
  %v20 = vld [vmem:[%s0 + $0x10] sm:$0xff]
  %v21 = vld [vmem:[%s0 + $0x18] sm:$0xff]
  %v22 = vld [vmem:[%s0 + $0x20] sm:$0xff]
  %v23 = vld [vmem:[%s0 + $0x28] sm:$0xff]
  %v24 = vld [vmem:[%s0 + $0x30] sm:$0xff]
  %v25 = vld [vmem:[%s0 + $0x38] sm:$0xff]
  %26 = vrot.lane.b32.xlu0 %v18, 17
  %v27 = vpop.permute.xlu0 %26
  %28 = vrot.lane.b32.xlu0 %v22, 17
  %v29 = vpop.permute.xlu0 %28
  %30 = vrot.lane.b32.xlu0 %v19, 17
  %v31 = vpop.permute.xlu0 %30
  %32 = vrot.lane.b32.xlu0 %v23, 17
  %v33 = vpop.permute.xlu0 %32
  %34 = vrot.lane.b32.xlu0 %v20, 17
  %v35 = vpop.permute.xlu0 %34
  %36 = vrot.lane.b32.xlu0 %v24, 17
  %v37 = vpop.permute.xlu0 %36
  %38 = vrot.lane.b32.xlu0 %v21, 17
  %v39 = vpop.permute.xlu0 %38
  %40 = vrot.lane.b32.xlu0 %v25, 17
  %v41 = vpop.permute.xlu0 %40
  %v42 = vlaneseq
  %v43 = vand.u32 %v42, 127
  %vm44 = vcmp.lt.s32.totalorder %v43, 17
  %v45 = vsel %vm44, %v35, %v39
  %v46 = vsel %vm44, %v37, %v41
  %v47 = vsel %vm44, %v31, %v35
  %v48 = vsel %vm44, %v33, %v37
  %v49 = vsel %vm44, %v27, %v31
  %v50 = vsel %vm44, %v29, %v33
  %v51 = vsel %vm44, %v39, %v27
  %v52 = vsel %vm44, %v41, %v29
  %v53 = vld [vmem:[%s3] sm:$0xf]
  %v55 = vlaneseq
  %v56 = vshrl.u32 %v55, 7
  %v57 = vsub.s32 0, %v56
  %v58 = vrot.slane %v53, %v57
  %v59 = vlaneseq
  %v60 = vshrl.u32 %v59, 7
  %v61 = vsub.s32 1, %v60
  %v62 = vrot.slane %v53, %v61
  %v63 = vlaneseq
  %v64 = vshrl.u32 %v63, 7
  %v65 = vsub.s32 2, %v64
  %v66 = vrot.slane %v53, %v65
  %v67 = vlaneseq
  %v68 = vshrl.u32 %v67, 7
  %v69 = vsub.s32 3, %v68
  %v70 = vrot.slane %v53, %v69
  %v75 = vmul.f32 %v51, %v58
  %v76 = vmul.f32 %v49, %v62
  %v77 = vmul.f32 %v47, %v66
  %v78 = vmul.f32 %v45, %v70
  %v79 = vmul.f32 %v52, %v58
  %v80 = vmul.f32 %v50, %v62
  %v81 = vmul.f32 %v48, %v66
  %v82 = vmul.f32 %v46, %v70
  %83 = vrot.lane.b32.xlu0 %v18, 16
  %v84 = vpop.permute.xlu0 %83
  %85 = vrot.lane.b32.xlu0 %v22, 16
  %v86 = vpop.permute.xlu0 %85
  %87 = vrot.lane.b32.xlu0 %v19, 16
  %v88 = vpop.permute.xlu0 %87
  %89 = vrot.lane.b32.xlu0 %v23, 16
  %v90 = vpop.permute.xlu0 %89
  %91 = vrot.lane.b32.xlu0 %v20, 16
  %v92 = vpop.permute.xlu0 %91
  %93 = vrot.lane.b32.xlu0 %v24, 16
  %v94 = vpop.permute.xlu0 %93
  %95 = vrot.lane.b32.xlu0 %v21, 16
  %v96 = vpop.permute.xlu0 %95
  %97 = vrot.lane.b32.xlu0 %v25, 16
  %v98 = vpop.permute.xlu0 %97
  %vm99 = vcmp.lt.s32.totalorder %v43, 16
  %v100 = vsel %vm99, %v92, %v96
  %v101 = vsel %vm99, %v94, %v98
  %v102 = vsel %vm99, %v88, %v92
  %v103 = vsel %vm99, %v90, %v94
  %v104 = vsel %vm99, %v84, %v88
  %v105 = vsel %vm99, %v86, %v90
  %v106 = vsel %vm99, %v96, %v84
  %v107 = vsel %vm99, %v98, %v86
  %s108 = scalar_lea.vmem %s3, 4
  %v109 = vld [vmem:[%s108] sm:$0xf]
  %v111 = vlaneseq
  %v112 = vshrl.u32 %v111, 7
  %v113 = vsub.s32 0, %v112
  %v114 = vrot.slane %v109, %v113
  %v115 = vlaneseq
  %v116 = vshrl.u32 %v115, 7
  %v117 = vsub.s32 1, %v116
  %v118 = vrot.slane %v109, %v117
  %v119 = vlaneseq
  %v120 = vshrl.u32 %v119, 7
  %v121 = vsub.s32 2, %v120
  %v122 = vrot.slane %v109, %v121
  %v123 = vlaneseq
  %v124 = vshrl.u32 %v123, 7
  %v125 = vsub.s32 3, %v124
  %v126 = vrot.slane %v109, %v125
  %v131 = vmul.f32 %v106, %v114
  %v132 = vmul.f32 %v104, %v118
  %v133 = vmul.f32 %v102, %v122
  %v134 = vmul.f32 %v100, %v126
  %v135 = vmul.f32 %v107, %v114
  %v136 = vmul.f32 %v105, %v118
  %v137 = vmul.f32 %v103, %v122
  %v138 = vmul.f32 %v101, %v126
  %139 = vrot.lane.b32.xlu0 %v18, 15
  %v140 = vpop.permute.xlu0 %139
  %141 = vrot.lane.b32.xlu0 %v22, 15
  %v142 = vpop.permute.xlu0 %141
  %143 = vrot.lane.b32.xlu0 %v19, 15
  %v144 = vpop.permute.xlu0 %143
  %145 = vrot.lane.b32.xlu0 %v23, 15
  %v146 = vpop.permute.xlu0 %145
  %147 = vrot.lane.b32.xlu0 %v20, 15
  %v148 = vpop.permute.xlu0 %147
  %149 = vrot.lane.b32.xlu0 %v24, 15
  %v150 = vpop.permute.xlu0 %149
  %151 = vrot.lane.b32.xlu0 %v21, 15
  %v152 = vpop.permute.xlu0 %151
  %153 = vrot.lane.b32.xlu0 %v25, 15
  %v154 = vpop.permute.xlu0 %153
  %vm155 = vcmp.lt.s32.totalorder %v43, 15
  %v156 = vsel %vm155, %v148, %v152
  %v157 = vsel %vm155, %v150, %v154
  %v158 = vsel %vm155, %v144, %v148
  %v159 = vsel %vm155, %v146, %v150
  %v160 = vsel %vm155, %v140, %v144
  %v161 = vsel %vm155, %v142, %v146
  %v162 = vsel %vm155, %v152, %v140
  %v163 = vsel %vm155, %v154, %v142
  %s164 = scalar_lea.vmem %s3, 8
  %v165 = vld [vmem:[%s164] sm:$0xf]
  %v167 = vlaneseq
  %v168 = vshrl.u32 %v167, 7
  %v169 = vsub.s32 0, %v168
  %v170 = vrot.slane %v165, %v169
  %v171 = vlaneseq
  %v172 = vshrl.u32 %v171, 7
  %v173 = vsub.s32 1, %v172
  %v174 = vrot.slane %v165, %v173
  %v175 = vlaneseq
  %v176 = vshrl.u32 %v175, 7
  %v177 = vsub.s32 2, %v176
  %v178 = vrot.slane %v165, %v177
  %v179 = vlaneseq
  %v180 = vshrl.u32 %v179, 7
  %v181 = vsub.s32 3, %v180
  %v182 = vrot.slane %v165, %v181
  %v187 = vmul.f32 %v162, %v170
  %v188 = vmul.f32 %v160, %v174
  %v189 = vmul.f32 %v158, %v178
  %v190 = vmul.f32 %v156, %v182
  %v191 = vmul.f32 %v163, %v170
  %v192 = vmul.f32 %v161, %v174
  %v193 = vmul.f32 %v159, %v178
  %v194 = vmul.f32 %v157, %v182
  %195 = vrot.lane.b32.xlu0 %v18, 1
  %v196 = vpop.permute.xlu0 %195
  %197 = vrot.lane.b32.xlu0 %v22, 1
  %v198 = vpop.permute.xlu0 %197
  %199 = vrot.lane.b32.xlu0 %v19, 1
  %v200 = vpop.permute.xlu0 %199
  %201 = vrot.lane.b32.xlu0 %v23, 1
  %v202 = vpop.permute.xlu0 %201
  %203 = vrot.lane.b32.xlu0 %v20, 1
  %v204 = vpop.permute.xlu0 %203
  %205 = vrot.lane.b32.xlu0 %v24, 1
  %v206 = vpop.permute.xlu0 %205
  %207 = vrot.lane.b32.xlu0 %v21, 1
  %v208 = vpop.permute.xlu0 %207
  %209 = vrot.lane.b32.xlu0 %v25, 1
  %v210 = vpop.permute.xlu0 %209
  %vm211 = vcmp.lt.s32.totalorder %v43, 1
  %v212 = vsel %vm211, %v204, %v208
  %v213 = vsel %vm211, %v206, %v210
  %v214 = vsel %vm211, %v200, %v204
  %v215 = vsel %vm211, %v202, %v206
  %v216 = vsel %vm211, %v196, %v200
  %v217 = vsel %vm211, %v198, %v202
  %v218 = vsel %vm211, %v208, %v196
  %v219 = vsel %vm211, %v210, %v198
  %s220 = scalar_lea.vmem %s3, 12
  %v221 = vld [vmem:[%s220] sm:$0xf]
  %v223 = vlaneseq
  %v224 = vshrl.u32 %v223, 7
  %v225 = vsub.s32 0, %v224
  %v226 = vrot.slane %v221, %v225
  %v227 = vlaneseq
  %v228 = vshrl.u32 %v227, 7
  %v229 = vsub.s32 1, %v228
  %v230 = vrot.slane %v221, %v229
  %v231 = vlaneseq
  %v232 = vshrl.u32 %v231, 7
  %v233 = vsub.s32 2, %v232
  %v234 = vrot.slane %v221, %v233
  %v235 = vlaneseq
  %v236 = vshrl.u32 %v235, 7
  %v237 = vsub.s32 3, %v236
  %v238 = vrot.slane %v221, %v237
  %v243 = vmul.f32 %v218, %v226
  %v244 = vmul.f32 %v216, %v230
  %v245 = vmul.f32 %v214, %v234
  %v246 = vmul.f32 %v212, %v238
  %v247 = vmul.f32 %v219, %v226
  %v248 = vmul.f32 %v217, %v230
  %v249 = vmul.f32 %v215, %v234
  %v250 = vmul.f32 %v213, %v238
  %251 = vrot.lane.b32.xlu0 %v18, 127
  %v252 = vpop.permute.xlu0 %251
  %253 = vrot.lane.b32.xlu0 %v22, 127
  %v254 = vpop.permute.xlu0 %253
  %255 = vrot.lane.b32.xlu0 %v19, 127
  %v256 = vpop.permute.xlu0 %255
  %257 = vrot.lane.b32.xlu0 %v23, 127
  %v258 = vpop.permute.xlu0 %257
  %259 = vrot.lane.b32.xlu0 %v20, 127
  %v260 = vpop.permute.xlu0 %259
  %261 = vrot.lane.b32.xlu0 %v24, 127
  %v262 = vpop.permute.xlu0 %261
  %263 = vrot.lane.b32.xlu0 %v21, 127
  %v264 = vpop.permute.xlu0 %263
  %265 = vrot.lane.b32.xlu0 %v25, 127
  %v266 = vpop.permute.xlu0 %265
  %vm267 = vcmp.lt.s32.totalorder %v43, 127
  %v268 = vsel %vm267, %v260, %v264
  %v269 = vsel %vm267, %v262, %v266
  %v270 = vsel %vm267, %v256, %v260
  %v271 = vsel %vm267, %v258, %v262
  %v272 = vsel %vm267, %v252, %v256
  %v273 = vsel %vm267, %v254, %v258
  %v274 = vsel %vm267, %v264, %v252
  %v275 = vsel %vm267, %v266, %v254
  %s276 = scalar_lea.vmem %s3, 20
  %v277 = vld [vmem:[%s276] sm:$0xf]
  %v279 = vlaneseq
  %v280 = vshrl.u32 %v279, 7
  %v281 = vsub.s32 0, %v280
  %v282 = vrot.slane %v277, %v281
  %v283 = vlaneseq
  %v284 = vshrl.u32 %v283, 7
  %v285 = vsub.s32 1, %v284
  %v286 = vrot.slane %v277, %v285
  %v287 = vlaneseq
  %v288 = vshrl.u32 %v287, 7
  %v289 = vsub.s32 2, %v288
  %v290 = vrot.slane %v277, %v289
  %v291 = vlaneseq
  %v292 = vshrl.u32 %v291, 7
  %v293 = vsub.s32 3, %v292
  %v294 = vrot.slane %v277, %v293
  %v299 = vmul.f32 %v272, %v282
  %v300 = vmul.f32 %v270, %v286
  %v301 = vmul.f32 %v268, %v290
  %v302 = vmul.f32 %v274, %v294
  %v303 = vmul.f32 %v273, %v282
  %v304 = vmul.f32 %v271, %v286
  %v305 = vmul.f32 %v269, %v290
  %v306 = vmul.f32 %v275, %v294
  %307 = vrot.lane.b32.xlu0 %v18, 113
  %v308 = vpop.permute.xlu0 %307
  %309 = vrot.lane.b32.xlu0 %v22, 113
  %v310 = vpop.permute.xlu0 %309
  %311 = vrot.lane.b32.xlu0 %v19, 113
  %v312 = vpop.permute.xlu0 %311
  %313 = vrot.lane.b32.xlu0 %v23, 113
  %v314 = vpop.permute.xlu0 %313
  %315 = vrot.lane.b32.xlu0 %v20, 113
  %v316 = vpop.permute.xlu0 %315
  %317 = vrot.lane.b32.xlu0 %v24, 113
  %v318 = vpop.permute.xlu0 %317
  %319 = vrot.lane.b32.xlu0 %v21, 113
  %v320 = vpop.permute.xlu0 %319
  %321 = vrot.lane.b32.xlu0 %v25, 113
  %v322 = vpop.permute.xlu0 %321
  %vm323 = vcmp.lt.s32.totalorder %v43, 113
  %v324 = vsel %vm323, %v316, %v320
  %v325 = vsel %vm323, %v318, %v322
  %v326 = vsel %vm323, %v312, %v316
  %v327 = vsel %vm323, %v314, %v318
  %v328 = vsel %vm323, %v308, %v312
  %v329 = vsel %vm323, %v310, %v314
  %v330 = vsel %vm323, %v320, %v308
  %v331 = vsel %vm323, %v322, %v310
  %s332 = scalar_lea.vmem %s3, 24
  %v333 = vld [vmem:[%s332] sm:$0xf]
  %v335 = vlaneseq
  %v336 = vshrl.u32 %v335, 7
  %v337 = vsub.s32 0, %v336
  %v338 = vrot.slane %v333, %v337
  %v339 = vlaneseq
  %v340 = vshrl.u32 %v339, 7
  %v341 = vsub.s32 1, %v340
  %v342 = vrot.slane %v333, %v341
  %v343 = vlaneseq
  %v344 = vshrl.u32 %v343, 7
  %v345 = vsub.s32 2, %v344
  %v346 = vrot.slane %v333, %v345
  %v347 = vlaneseq
  %v348 = vshrl.u32 %v347, 7
  %v349 = vsub.s32 3, %v348
  %v350 = vrot.slane %v333, %v349
  %v355 = vmul.f32 %v328, %v338
  %v356 = vmul.f32 %v326, %v342
  %v357 = vmul.f32 %v324, %v346
  %v358 = vmul.f32 %v330, %v350
  %v359 = vmul.f32 %v329, %v338
  %v360 = vmul.f32 %v327, %v342
  %v361 = vmul.f32 %v325, %v346
  %v362 = vmul.f32 %v331, %v350
  %363 = vrot.lane.b32.xlu0 %v18, 112
  %v364 = vpop.permute.xlu0 %363
  %365 = vrot.lane.b32.xlu0 %v22, 112
  %v366 = vpop.permute.xlu0 %365
  %367 = vrot.lane.b32.xlu0 %v19, 112
  %v368 = vpop.permute.xlu0 %367
  %369 = vrot.lane.b32.xlu0 %v23, 112
  %v370 = vpop.permute.xlu0 %369
  %371 = vrot.lane.b32.xlu0 %v20, 112
  %v372 = vpop.permute.xlu0 %371
  %373 = vrot.lane.b32.xlu0 %v24, 112
  %v374 = vpop.permute.xlu0 %373
  %375 = vrot.lane.b32.xlu0 %v21, 112
  %v376 = vpop.permute.xlu0 %375
  %377 = vrot.lane.b32.xlu0 %v25, 112
  %v378 = vpop.permute.xlu0 %377
  %vm379 = vcmp.lt.s32.totalorder %v43, 112
  %v380 = vsel %vm379, %v372, %v376
  %v381 = vsel %vm379, %v374, %v378
  %v382 = vsel %vm379, %v368, %v372
  %v383 = vsel %vm379, %v370, %v374
  %v384 = vsel %vm379, %v364, %v368
  %v385 = vsel %vm379, %v366, %v370
  %v386 = vsel %vm379, %v376, %v364
  %v387 = vsel %vm379, %v378, %v366
  %s388 = scalar_lea.vmem %s3, 28
  %v389 = vld [vmem:[%s388] sm:$0xf]
  %v391 = vlaneseq
  %v392 = vshrl.u32 %v391, 7
  %v393 = vsub.s32 0, %v392
  %v394 = vrot.slane %v389, %v393
  %v395 = vlaneseq
  %v396 = vshrl.u32 %v395, 7
  %v397 = vsub.s32 1, %v396
  %v398 = vrot.slane %v389, %v397
  %v399 = vlaneseq
  %v400 = vshrl.u32 %v399, 7
  %v401 = vsub.s32 2, %v400
  %v402 = vrot.slane %v389, %v401
  %v403 = vlaneseq
  %v404 = vshrl.u32 %v403, 7
  %v405 = vsub.s32 3, %v404
  %v406 = vrot.slane %v389, %v405
  %v411 = vmul.f32 %v384, %v394
  %v412 = vmul.f32 %v382, %v398
  %v413 = vmul.f32 %v380, %v402
  %v414 = vmul.f32 %v386, %v406
  %v415 = vmul.f32 %v385, %v394
  %v416 = vmul.f32 %v383, %v398
  %v417 = vmul.f32 %v381, %v402
  %v418 = vmul.f32 %v387, %v406
  %419 = vrot.lane.b32.xlu0 %v18, 111
  %v420 = vpop.permute.xlu0 %419
  %421 = vrot.lane.b32.xlu0 %v22, 111
  %v422 = vpop.permute.xlu0 %421
  %423 = vrot.lane.b32.xlu0 %v19, 111
  %v424 = vpop.permute.xlu0 %423
  %425 = vrot.lane.b32.xlu0 %v23, 111
  %v426 = vpop.permute.xlu0 %425
  %427 = vrot.lane.b32.xlu0 %v20, 111
  %v428 = vpop.permute.xlu0 %427
  %429 = vrot.lane.b32.xlu0 %v24, 111
  %v430 = vpop.permute.xlu0 %429
  %431 = vrot.lane.b32.xlu0 %v21, 111
  %v432 = vpop.permute.xlu0 %431
  %433 = vrot.lane.b32.xlu0 %v25, 111
  %v434 = vpop.permute.xlu0 %433
  %vm435 = vcmp.lt.s32.totalorder %v43, 111
  %v436 = vsel %vm435, %v428, %v432
  %v437 = vsel %vm435, %v430, %v434
  %v438 = vsel %vm435, %v424, %v428
  %v439 = vsel %vm435, %v426, %v430
  %v440 = vsel %vm435, %v420, %v424
  %v441 = vsel %vm435, %v422, %v426
  %v442 = vsel %vm435, %v432, %v420
  %v443 = vsel %vm435, %v434, %v422
  %s444 = scalar_lea.vmem %s3, 32
  %v445 = vld [vmem:[%s444] sm:$0xf]
  %v447 = vlaneseq
  %v448 = vshrl.u32 %v447, 7
  %v449 = vsub.s32 0, %v448
  %v450 = vrot.slane %v445, %v449
  %v451 = vlaneseq
  %v452 = vshrl.u32 %v451, 7
  %v453 = vsub.s32 1, %v452
  %v454 = vrot.slane %v445, %v453
  %v455 = vlaneseq
  %v456 = vshrl.u32 %v455, 7
  %v457 = vsub.s32 2, %v456
  %v458 = vrot.slane %v445, %v457
  %v459 = vlaneseq
  %v460 = vshrl.u32 %v459, 7
  %v461 = vsub.s32 3, %v460
  %v462 = vrot.slane %v445, %v461
  %v467 = vmul.f32 %v440, %v450
  %v468 = vmul.f32 %v438, %v454
  %v469 = vmul.f32 %v436, %v458
  %v470 = vmul.f32 %v442, %v462
  %v471 = vmul.f32 %v441, %v450
  %v472 = vmul.f32 %v439, %v454
  %v473 = vmul.f32 %v437, %v458
  %v474 = vmul.f32 %v443, %v462
  %v475 = vpack.c.bf16 %v79, %v75
  %v476 = vpack.c.bf16 %v80, %v76
  %v477 = vpack.c.bf16 %v81, %v77
  %v478 = vpack.c.bf16 %v82, %v78
  %v479 = vpack.c.bf16 %v135, %v131
  %v480 = vpack.c.bf16 %v136, %v132
  %v481 = vpack.c.bf16 %v137, %v133
  %v482 = vpack.c.bf16 %v138, %v134
  %v483 = vpack.c.bf16 %v191, %v187
  %v484 = vpack.c.bf16 %v192, %v188
  %v485 = vpack.c.bf16 %v193, %v189
  %v486 = vpack.c.bf16 %v194, %v190
  %v487 = vpack.c.bf16 %v247, %v243
  %v488 = vpack.c.bf16 %v248, %v244
  %v489 = vpack.c.bf16 %v249, %v245
  %v490 = vpack.c.bf16 %v250, %v246
  %v491 = vpack.c.bf16 %v22, %v18
  %v492 = vpack.c.bf16 %v23, %v19
  %v493 = vpack.c.bf16 %v24, %v20
  %v494 = vpack.c.bf16 %v25, %v21
  %v495 = vpack.c.bf16 %v303, %v299
  %v496 = vpack.c.bf16 %v304, %v300
  %v497 = vpack.c.bf16 %v305, %v301
  %v498 = vpack.c.bf16 %v306, %v302
  %v499 = vpack.c.bf16 %v359, %v355
  %v500 = vpack.c.bf16 %v360, %v356
  %v501 = vpack.c.bf16 %v361, %v357
  %v502 = vpack.c.bf16 %v362, %v358
  %v503 = vpack.c.bf16 %v415, %v411
  %v504 = vpack.c.bf16 %v416, %v412
  %v505 = vpack.c.bf16 %v417, %v413
  %v506 = vpack.c.bf16 %v418, %v414
  %v507 = vpack.c.bf16 %v471, %v467
  %v508 = vpack.c.bf16 %v472, %v468
  %v509 = vpack.c.bf16 %v473, %v469
  %v510 = vpack.c.bf16 %v474, %v470
  %v511 = vld [vmem:[%s1] sm:$0xff]
  %v512 = vld [vmem:[%s1 + $0x8] sm:$0xff]
  %v513 = vpack.c.bf16 %v511, %v511
  %v514 = vpack.c.bf16 %v512, %v512
  %v515 = vld [vmem:[%s2] sm:$0xff]
  %517 = vset.pattern.permute.xlu0 0
  %518 = vperm.xlu0 %517, %v515
  %v519 = vpop.permute.xlu0 %518
  %vm521 = vcmask 130048
  %v523 = vsel %vm521, %v514, 0
  %525 = vmatprep.subr.bf16.mxu0 %v476
  %526 = vmatpush1.bf16.msra.mxu0 %v475
  %527 = vmatprep.subr.bf16.mxu0 %v480
  %528 = vmatpush1.bf16.msra.mxu0 %v479
  %529 = vmatprep.subr.bf16.mxu0 %v484
  %530 = vmatpush1.bf16.msra.mxu0 %v483
  %531 = vmatprep.subr.bf16.mxu0 %v488
  %532 = vmatpush1.bf16.msra.mxu0 %v487
  %533 = vmatprep.subr.bf16.mxu0 %v492
  %534 = vmatpush1.bf16.msra.mxu0 %v491
  %535 = vmatprep.subr.bf16.mxu0 %v496
  %536 = vmatpush1.bf16.msra.mxu0 %v495
  %537 = vmatprep.subr.bf16.mxu0 %v500
  %538 = vmatpush1.bf16.msra.mxu0 %v499
  %539 = vmatprep.subr.bf16.mxu0 %v504
  %540 = vmatpush1.bf16.msra.mxu0 %v503
  %541 = vmatprep.subr.bf16.mxu0 %v508
  %542 = vmatpush1.bf16.msra.mxu0 %v507
  %543 = vmatprep.subr.bf16.mxu0 0
  %544 = vmatpush1.bf16.msra.mxu0 0
  %545 = vmatprep.subr.bf16.mxu0 0
  %546 = vmatpush1.bf16.msra.mxu0 0
  %547 = vmatprep.subr.bf16.mxu0 0
  %548 = vmatpush1.bf16.msra.mxu0 0
  %549 = vmatprep.subr.bf16.mxu0 0
  %550 = vmatpush1.bf16.msra.mxu0 0
  %551 = vmatprep.subr.bf16.mxu0 0
  %552 = vmatpush1.bf16.msra.mxu0 0
  %553 = vmatprep.subr.bf16.mxu0 0
  %554 = vmatpush1.bf16.msra.mxu0 0
  %555 = vmatprep.subr.bf16.mxu0 0
  %556 = vmatpush1.bf16.msra.mxu0 0
  %557 = vmatprep.mubr.bf16.mxu0 %v523
  %558 = vmatmul.mubr.bf16.gmra.mrb[0].mxu0 %v513
  %v559 = vpop.f32.mrb[0].mxu0
  %v560 = vadd.f32 %v519, %v559
  %v561 = vpop.f32.mrb[0].mxu0
  %v562 = vadd.f32 %v519, %v561
  %v563 = vpop.f32.mrb[0].mxu0
  %v564 = vpop.f32.mrb[0].mxu0
  %565 = vdwg.mxu0
  %566 = vmatprep.subr.bf16.mxu0 %v478
  %567 = vmatpush1.bf16.msra.mxu0 %v477
  %568 = vmatprep.subr.bf16.mxu0 %v482
  %569 = vmatpush1.bf16.msra.mxu0 %v481
  %570 = vmatprep.subr.bf16.mxu0 %v486
  %571 = vmatpush1.bf16.msra.mxu0 %v485
  %572 = vmatprep.subr.bf16.mxu0 %v490
  %573 = vmatpush1.bf16.msra.mxu0 %v489
  %574 = vmatprep.subr.bf16.mxu0 %v494
  %575 = vmatpush1.bf16.msra.mxu0 %v493
  %576 = vmatprep.subr.bf16.mxu0 %v498
  %577 = vmatpush1.bf16.msra.mxu0 %v497
  %578 = vmatprep.subr.bf16.mxu0 %v502
  %579 = vmatpush1.bf16.msra.mxu0 %v501
  %580 = vmatprep.subr.bf16.mxu0 %v506
  %581 = vmatpush1.bf16.msra.mxu0 %v505
  %582 = vmatprep.subr.bf16.mxu0 %v510
  %583 = vmatpush1.bf16.msra.mxu0 %v509
  %584 = vmatprep.subr.bf16.mxu0 0
  %585 = vmatpush1.bf16.msra.mxu0 0
  %586 = vmatprep.subr.bf16.mxu0 0
  %587 = vmatpush1.bf16.msra.mxu0 0
  %588 = vmatprep.subr.bf16.mxu0 0
  %589 = vmatpush1.bf16.msra.mxu0 0
  %590 = vmatprep.subr.bf16.mxu0 0
  %591 = vmatpush1.bf16.msra.mxu0 0
  %592 = vmatprep.subr.bf16.mxu0 0
  %593 = vmatpush1.bf16.msra.mxu0 0
  %594 = vmatprep.subr.bf16.mxu0 0
  %595 = vmatpush1.bf16.msra.mxu0 0
  %596 = vmatprep.subr.bf16.mxu0 0
  %597 = vmatpush1.bf16.msra.mxu0 0
  %598 = vmatprep.mubr.bf16.mxu0 %v523
  %599 = vmatmul.mubr.bf16.gmra.mrb[0].mxu0 %v513
  %v600 = vpop.f32.mrb[0].mxu0
  %v601 = vadd.f32 %v519, %v600
  %v602 = vpop.f32.mrb[0].mxu0
  %v603 = vadd.f32 %v519, %v602
  %v604 = vpop.f32.mrb[0].mxu0
  %v605 = vpop.f32.mrb[0].mxu0
  %606 = vdwg.mxu0
  %v607 = vmax.f32 %v560, 0.0
  %v608 = vmax.f32 %v562, 0.0
  %v609 = vmax.f32 %v601, 0.0
  %v610 = vmax.f32 %v603, 0.0
  %611 = vrot.lane.b32.xlu0 %v607, 17
  %v612 = vpop.permute.xlu0 %611
  %613 = vrot.lane.b32.xlu0 %v608, 17
  %v614 = vpop.permute.xlu0 %613
  %615 = vrot.lane.b32.xlu0 %v609, 17
  %v616 = vpop.permute.xlu0 %615
  %617 = vrot.lane.b32.xlu0 %v610, 17
  %v618 = vpop.permute.xlu0 %617
  %v619 = vsel %vm44, %v616, %v618
  %v620 = vsel %vm44, %v614, %v616
  %v621 = vsel %vm44, %v612, %v614
  %v622 = vsel %vm44, %v618, %v612
  %v623 = vmul.f32 %v622, %v58
  %v624 = vmul.f32 %v621, %v62
  %v625 = vmul.f32 %v620, %v66
  %v626 = vmul.f32 %v619, %v70
  %627 = vrot.lane.b32.xlu0 %v607, 16
  %v628 = vpop.permute.xlu0 %627
  %629 = vrot.lane.b32.xlu0 %v608, 16
  %v630 = vpop.permute.xlu0 %629
  %631 = vrot.lane.b32.xlu0 %v609, 16
  %v632 = vpop.permute.xlu0 %631
  %633 = vrot.lane.b32.xlu0 %v610, 16
  %v634 = vpop.permute.xlu0 %633
  %v635 = vsel %vm99, %v632, %v634
  %v636 = vsel %vm99, %v630, %v632
  %v637 = vsel %vm99, %v628, %v630
  %v638 = vsel %vm99, %v634, %v628
  %v639 = vmul.f32 %v638, %v114
  %v640 = vmul.f32 %v637, %v118
  %v641 = vmul.f32 %v636, %v122
  %v642 = vmul.f32 %v635, %v126
  %643 = vrot.lane.b32.xlu0 %v607, 15
  %v644 = vpop.permute.xlu0 %643
  %645 = vrot.lane.b32.xlu0 %v608, 15
  %v646 = vpop.permute.xlu0 %645
  %647 = vrot.lane.b32.xlu0 %v609, 15
  %v648 = vpop.permute.xlu0 %647
  %649 = vrot.lane.b32.xlu0 %v610, 15
  %v650 = vpop.permute.xlu0 %649
  %v651 = vsel %vm155, %v648, %v650
  %v652 = vsel %vm155, %v646, %v648
  %v653 = vsel %vm155, %v644, %v646
  %v654 = vsel %vm155, %v650, %v644
  %v655 = vmul.f32 %v654, %v170
  %v656 = vmul.f32 %v653, %v174
  %v657 = vmul.f32 %v652, %v178
  %v658 = vmul.f32 %v651, %v182
  %659 = vrot.lane.b32.xlu0 %v607, 1
  %v660 = vpop.permute.xlu0 %659
  %661 = vrot.lane.b32.xlu0 %v608, 1
  %v662 = vpop.permute.xlu0 %661
  %663 = vrot.lane.b32.xlu0 %v609, 1
  %v664 = vpop.permute.xlu0 %663
  %665 = vrot.lane.b32.xlu0 %v610, 1
  %v666 = vpop.permute.xlu0 %665
  %v667 = vsel %vm211, %v664, %v666
  %v668 = vsel %vm211, %v662, %v664
  %v669 = vsel %vm211, %v660, %v662
  %v670 = vsel %vm211, %v666, %v660
  %v671 = vmul.f32 %v670, %v226
  %v672 = vmul.f32 %v669, %v230
  %v673 = vmul.f32 %v668, %v234
  %v674 = vmul.f32 %v667, %v238
  %675 = vrot.lane.b32.xlu0 %v607, 127
  %v676 = vpop.permute.xlu0 %675
  %677 = vrot.lane.b32.xlu0 %v608, 127
  %v678 = vpop.permute.xlu0 %677
  %679 = vrot.lane.b32.xlu0 %v609, 127
  %v680 = vpop.permute.xlu0 %679
  %681 = vrot.lane.b32.xlu0 %v610, 127
  %v682 = vpop.permute.xlu0 %681
  %v683 = vsel %vm267, %v680, %v682
  %v684 = vsel %vm267, %v678, %v680
  %v685 = vsel %vm267, %v676, %v678
  %v686 = vsel %vm267, %v682, %v676
  %v687 = vmul.f32 %v685, %v282
  %v688 = vmul.f32 %v684, %v286
  %v689 = vmul.f32 %v683, %v290
  %v690 = vmul.f32 %v686, %v294
  %691 = vrot.lane.b32.xlu0 %v607, 113
  %v692 = vpop.permute.xlu0 %691
  %693 = vrot.lane.b32.xlu0 %v608, 113
  %v694 = vpop.permute.xlu0 %693
  %695 = vrot.lane.b32.xlu0 %v609, 113
  %v696 = vpop.permute.xlu0 %695
  %697 = vrot.lane.b32.xlu0 %v610, 113
  %v698 = vpop.permute.xlu0 %697
  %v699 = vsel %vm323, %v696, %v698
  %v700 = vsel %vm323, %v694, %v696
  %v701 = vsel %vm323, %v692, %v694
  %v702 = vsel %vm323, %v698, %v692
  %v703 = vmul.f32 %v701, %v338
  %v704 = vmul.f32 %v700, %v342
  %v705 = vmul.f32 %v699, %v346
  %v706 = vmul.f32 %v702, %v350
  %707 = vrot.lane.b32.xlu0 %v607, 112
  %v708 = vpop.permute.xlu0 %707
  %709 = vrot.lane.b32.xlu0 %v608, 112
  %v710 = vpop.permute.xlu0 %709
  %711 = vrot.lane.b32.xlu0 %v609, 112
  %v712 = vpop.permute.xlu0 %711
  %713 = vrot.lane.b32.xlu0 %v610, 112
  %v714 = vpop.permute.xlu0 %713
  %v715 = vsel %vm379, %v712, %v714
  %v716 = vsel %vm379, %v710, %v712
  %v717 = vsel %vm379, %v708, %v710
  %v718 = vsel %vm379, %v714, %v708
  %v719 = vmul.f32 %v717, %v394
  %v720 = vmul.f32 %v716, %v398
  %v721 = vmul.f32 %v715, %v402
  %v722 = vmul.f32 %v718, %v406
  %723 = vrot.lane.b32.xlu0 %v607, 111
  %v724 = vpop.permute.xlu0 %723
  %725 = vrot.lane.b32.xlu0 %v608, 111
  %v726 = vpop.permute.xlu0 %725
  %727 = vrot.lane.b32.xlu0 %v609, 111
  %v728 = vpop.permute.xlu0 %727
  %729 = vrot.lane.b32.xlu0 %v610, 111
  %v730 = vpop.permute.xlu0 %729
  %v731 = vsel %vm435, %v728, %v730
  %v732 = vsel %vm435, %v726, %v728
  %v733 = vsel %vm435, %v724, %v726
  %v734 = vsel %vm435, %v730, %v724
  %v735 = vmul.f32 %v733, %v450
  %v736 = vmul.f32 %v732, %v454
  %v737 = vmul.f32 %v731, %v458
  %v738 = vmul.f32 %v734, %v462
  %v739 = vpack.c.bf16 %v639, %v623
  %v740 = vpack.c.bf16 %v640, %v624
  %v741 = vpack.c.bf16 %v641, %v625
  %v742 = vpack.c.bf16 %v642, %v626
  %v743 = vpack.c.bf16 %v671, %v655
  %v744 = vpack.c.bf16 %v672, %v656
  %v745 = vpack.c.bf16 %v673, %v657
  %v746 = vpack.c.bf16 %v674, %v658
  %v747 = vpack.c.bf16 %v687, %v607
  %v748 = vpack.c.bf16 %v688, %v608
  %v749 = vpack.c.bf16 %v689, %v609
  %v750 = vpack.c.bf16 %v690, %v610
  %v751 = vpack.c.bf16 %v719, %v703
  %v752 = vpack.c.bf16 %v720, %v704
  %v753 = vpack.c.bf16 %v721, %v705
  %v754 = vpack.c.bf16 %v722, %v706
  %v755 = vpack.c.bf16 %v735, %v735
  %v756 = vpack.c.bf16 %v736, %v736
  %v757 = vpack.c.bf16 %v737, %v737
  %v758 = vpack.c.bf16 %v738, %v738
  %v759 = vld [vmem:[%s1 + $0x10] sm:$0xff]
  %v760 = vpack.c.bf16 %v759, %v759
  %761 = vset.pattern.permute.xlu0 1
  %762 = vperm.xlu0 %761, %v515
  %v763 = vpop.permute.xlu0 %762
  %vm765 = vcmask 588800
  %v767 = vsel %vm765, %v760, 0
  %vm769 = vcmask 1043456
  %v771 = vsel %vm769, %v755, 0
  %v774 = vsel %vm769, %v756, 0
  %v777 = vsel %vm769, %v757, 0
  %v780 = vsel %vm769, %v758, 0
  %782 = vmatprep.subr.bf16.mxu0 %v740
  %783 = vmatpush1.bf16.msra.mxu0 %v739
  %784 = vmatprep.subr.bf16.mxu0 %v744
  %785 = vmatpush1.bf16.msra.mxu0 %v743
  %786 = vmatprep.subr.bf16.mxu0 %v748
  %787 = vmatpush1.bf16.msra.mxu0 %v747
  %788 = vmatprep.subr.bf16.mxu0 %v752
  %789 = vmatpush1.bf16.msra.mxu0 %v751
  %790 = vmatprep.subr.bf16.mxu0 %v774
  %791 = vmatpush1.bf16.msra.mxu0 %v771
  %792 = vmatprep.subr.bf16.mxu0 0
  %793 = vmatpush1.bf16.msra.mxu0 0
  %794 = vmatprep.subr.bf16.mxu0 0
  %795 = vmatpush1.bf16.msra.mxu0 0
  %796 = vmatprep.subr.bf16.mxu0 0
  %797 = vmatpush1.bf16.msra.mxu0 0
  %798 = vmatprep.subr.bf16.mxu0 0
  %799 = vmatpush1.bf16.msra.mxu0 0
  %800 = vmatprep.subr.bf16.mxu0 0
  %801 = vmatpush1.bf16.msra.mxu0 0
  %802 = vmatprep.subr.bf16.mxu0 0
  %803 = vmatpush1.bf16.msra.mxu0 0
  %804 = vmatprep.subr.bf16.mxu0 0
  %805 = vmatpush1.bf16.msra.mxu0 0
  %806 = vmatprep.subr.bf16.mxu0 0
  %807 = vmatpush1.bf16.msra.mxu0 0
  %808 = vmatprep.subr.bf16.mxu0 0
  %809 = vmatpush1.bf16.msra.mxu0 0
  %810 = vmatprep.subr.bf16.mxu0 0
  %811 = vmatpush1.bf16.msra.mxu0 0
  %812 = vmatprep.subr.bf16.mxu0 0
  %813 = vmatpush1.bf16.msra.mxu0 0
  %814 = vmatprep.mubr.bf16.mxu0 0
  %815 = vmatmul.mubr.bf16.gmra.mrb[0].mxu0 %v767
  %v816 = vpop.f32.mrb[0].mxu0
  %v817 = vadd.f32 %v763, %v816
  %v818 = vpop.f32.mrb[0].mxu0
  %v819 = vadd.f32 %v763, %v818
  %v820 = vpop.f32.mrb[0].mxu0
  %v821 = vpop.f32.mrb[0].mxu0
  %822 = vdwg.mxu0
  %823 = vmatprep.subr.bf16.mxu0 %v742
  %824 = vmatpush1.bf16.msra.mxu0 %v741
  %825 = vmatprep.subr.bf16.mxu0 %v746
  %826 = vmatpush1.bf16.msra.mxu0 %v745
  %827 = vmatprep.subr.bf16.mxu0 %v750
  %828 = vmatpush1.bf16.msra.mxu0 %v749
  %829 = vmatprep.subr.bf16.mxu0 %v754
  %830 = vmatpush1.bf16.msra.mxu0 %v753
  %831 = vmatprep.subr.bf16.mxu0 %v780
  %832 = vmatpush1.bf16.msra.mxu0 %v777
  %833 = vmatprep.subr.bf16.mxu0 0
  %834 = vmatpush1.bf16.msra.mxu0 0
  %835 = vmatprep.subr.bf16.mxu0 0
  %836 = vmatpush1.bf16.msra.mxu0 0
  %837 = vmatprep.subr.bf16.mxu0 0
  %838 = vmatpush1.bf16.msra.mxu0 0
  %839 = vmatprep.subr.bf16.mxu0 0
  %840 = vmatpush1.bf16.msra.mxu0 0
  %841 = vmatprep.subr.bf16.mxu0 0
  %842 = vmatpush1.bf16.msra.mxu0 0
  %843 = vmatprep.subr.bf16.mxu0 0
  %844 = vmatpush1.bf16.msra.mxu0 0
  %845 = vmatprep.subr.bf16.mxu0 0
  %846 = vmatpush1.bf16.msra.mxu0 0
  %847 = vmatprep.subr.bf16.mxu0 0
  %848 = vmatpush1.bf16.msra.mxu0 0
  %849 = vmatprep.subr.bf16.mxu0 0
  %850 = vmatpush1.bf16.msra.mxu0 0
  %851 = vmatprep.subr.bf16.mxu0 0
  %852 = vmatpush1.bf16.msra.mxu0 0
  %853 = vmatprep.subr.bf16.mxu0 0
  %854 = vmatpush1.bf16.msra.mxu0 0
  %855 = vmatprep.mubr.bf16.mxu0 0
  %856 = vmatmul.mubr.bf16.gmra.mrb[0].mxu0 %v767
  %v857 = vpop.f32.mrb[0].mxu0
  %v858 = vadd.f32 %v763, %v857
  %v859 = vpop.f32.mrb[0].mxu0
  %v860 = vadd.f32 %v763, %v859
  %v861 = vpop.f32.mrb[0].mxu0
  %v862 = vpop.f32.mrb[0].mxu0
  %863 = vdwg.mxu0
  %vm864 = vcmp.ge.f32.partialorder %v817, 0.0
  %vm865 = vcmp.ge.f32.partialorder %v819, 0.0
  %vm866 = vcmp.ge.f32.partialorder %v858, 0.0
  %vm867 = vcmp.ge.f32.partialorder %v860, 0.0
  %868 = vset.pattern.permute.xlu0 2
  %869 = vperm.xlu0 %868, %v515
  %v870 = vpop.permute.xlu0 %869
  %v872 = vmul.f32 %v870, %v817
  %v873 = vmul.f32 %v870, %v819
  %v874 = vmul.f32 %v870, %v858
  %v875 = vmul.f32 %v870, %v860
  %v876 = vsel %vm864, %v817, %v872
  %v877 = vsel %vm865, %v819, %v873
  %v878 = vsel %vm866, %v858, %v874
  %v879 = vsel %vm867, %v860, %v875
  %880 = vst [vmem:[%s4] sm:$0xff] %v876
  %881 = vst [vmem:[%s4 + $0x8] sm:$0xff] %v877
  %882 = vst [vmem:[%s4 + $0x10] sm:$0xff] %v878
  %883 = vst [vmem:[%s4 + $0x18] sm:$0xff] %v879
  // Predicated region
  $region18: #{inconv_forward.1} parent=0 // pred_check
    _
  $region19: #{inconv_forward.1} parent=0 // pred_check_branch
    %885 = sbr.rel (0) target = $region21
  $region20: #{inconv_forward.1} parent=0 // pred_region
    _
  $region21: #{inconv_forward.1} parent=0 // pred_fallthru
    _
  // Predicated region
  $region22: #{inconv_forward.1} parent=0 // pred_check
    _
  $region23: #{inconv_forward.1} parent=0 // pred_check_branch
    %887 = sbr.rel (0) target = $region25
  $region24: #{inconv_forward.1} parent=0 // pred_region
    _
  $region25: #{inconv_forward.1} parent=0 // pred_fallthru
    _

</llo_original>
